<compile_context>
chip_gen: v5e
topology: v5e:2x2
jax: 0.10.0
libtpu: 0.0.40
codegen_flags: <defaults>
</compile_context>

<pallas_src>
import math

import jax
import jax.numpy as jnp
from jax import lax
from jax.experimental import pallas as pl
from jax.experimental.pallas import tpu as pltpu

_MIB = 1024 * 1024


def _gelu_tanh(x):
    # matches the PyTorch `gelu` in the reference module (tanh approximation)
    return 0.5 * x * (1.0 + jnp.tanh(
        math.sqrt(2.0 / math.pi) * (x + 0.044715 * x * x * x)))


# ---------------------------------------------------------------------------
# Pass 1: fused Q/K/V projection (computed once per token).
# Q is pre-scaled by 1/sqrt(H); all outputs are bf16 (MXU operands only).
# ---------------------------------------------------------------------------
def _make_qkv_proj_kernel(inv_sqrt_h):
    def kernel(x_ref, wq_ref, bq_ref, wk_ref, bk_ref, wv_ref, bv_ref,
               q_ref, k_ref, v_ref):
        x = x_ref[...]                                           # (tS, H) bf16
        q = jnp.dot(x, wq_ref[...], preferred_element_type=jnp.float32) + bq_ref[...]
        q_ref[...] = (q * inv_sqrt_h).astype(q_ref.dtype)
        k = jnp.dot(x, wk_ref[...], preferred_element_type=jnp.float32) + bk_ref[...]
        k_ref[...] = k.astype(k_ref.dtype)
        v = jnp.dot(x, wv_ref[...], preferred_element_type=jnp.float32) + bv_ref[...]
        v_ref[...] = v.astype(v_ref.dtype)
    return kernel


# ---------------------------------------------------------------------------
# Pass 2: attention + FFN.  Grid = (batch, query tiles, intermediate tiles).
# Attention runs once per (b, q-tile) at ii == 0; its bf16 context persists in
# VMEM scratch across the FFN's ii axis; the FFN output accumulates in f32.
# ---------------------------------------------------------------------------
def _attn_ffn_kernel(q_ref, k_ref, v_ref, mask_ref,
                     wi_ref, bi_ref, wo_ref, bo_ref,
                     out_ref, ctx_scr, acc_scr):
    ii = pl.program_id(2)

    @pl.when(ii == 0)
    def _():
        # scores = q @ k^T without materializing a transpose (contract hidden)
        scores = lax.dot_general(
            q_ref[...], k_ref[...],
            dimension_numbers=(((1,), (1,)), ((), ())),
            preferred_element_type=jnp.float32)
        scores = scores + mask_ref[...].astype(jnp.float32)      # f32 softmax
        m = jnp.max(scores, axis=-1, keepdims=True)
        p = jnp.exp(scores - m)
        p = p * pl.reciprocal(jnp.sum(p, axis=-1, keepdims=True), approx=True)
        # dropout(p=0.1) -> identity (eval semantics)
        ctx = jnp.dot(p.astype(jnp.bfloat16), v_ref[...],
                      preferred_element_type=jnp.float32)
        ctx_scr[...] = ctx.astype(jnp.bfloat16)
        acc_scr[...] = jnp.zeros_like(acc_scr)

    inter = jnp.dot(ctx_scr[...], wi_ref[...],
                    preferred_element_type=jnp.float32) + bi_ref[...]
    inter = _gelu_tanh(inter)                       # f32 (correct on v5e too)
    acc_scr[...] += jnp.dot(inter.astype(jnp.bfloat16), wo_ref[...],
                            preferred_element_type=jnp.float32)

    @pl.when(ii == pl.num_programs(2) - 1)
    def _():
        out_ref[...] = (acc_scr[...] + bo_ref[...]).astype(out_ref.dtype)


# ---------------------------------------------------------------------------
# Helpers
# ---------------------------------------------------------------------------
def _spec(shape, index_map, single_buffer=False):
    if single_buffer:
        # grid-invariant operand: no need for double buffering
        return pl.BlockSpec(shape, index_map, pipeline_mode=pl.Buffered(1))
    return pl.BlockSpec(shape, index_map)


def _const_spec(shape, single_buffer):
    zeros = (0,) * len(shape)
    return _spec(shape, lambda *_: zeros, single_buffer)


def _vmem_cap_bytes():
    try:
        return int(pltpu.get_tpu_info().vmem_capacity_bytes)
    except Exception:   # hardware query unavailable -> be conservative (v7x-safe)
        return 64 * _MIB


def _vmem_limit(est_bytes, cap):
    headroom = 16 * _MIB   # leave room for compiler-internal scratch / DMA bufs
    return int(min(max(2 * est_bytes, 32 * _MIB), cap - headroom))


# ---------------------------------------------------------------------------
# Wrapper
# ---------------------------------------------------------------------------
def splinter_layer(hidden_states, attention_mask, params, *,
                   q_tile=None, i_tile=None):
    """hidden_states: (B, S, H); attention_mask: (B, S, S) additive mask."""
    B, S, H = hidden_states.shape
    I = params["wi"].shape[-1]
    cap = _vmem_cap_bytes()

    # Query tile: as large as the VMEM generation allows (bigger tiles amortize
    # the ~0.35us per-grid-step overhead); smaller on 64 MiB (v7x) parts.
    if q_tile is None:
        pref = 512 if cap >= 96 * _MIB else 256
        q_tile = S if S <= pref else next(
            (t for t in (pref, 256, 128) if S % t == 0), S)
    assert S % q_tile == 0
    n_q = S // q_tile

    # FFN intermediate tile: keeps only a slice of wi/wo/inter resident for
    # large I (most important under v7x's 64 MiB VMEM).
    if i_tile is None:
        pref_i = 2048 if cap >= 96 * _MIB else 1024
        i_tile = I if I <= pref_i else next(
            (t for t in (pref_i, 1024, 512) if I % t == 0), I)
    assert I % i_tile == 0
    n_i = I // i_tile

    bf16, f32 = 2, 4
    x_bf = hidden_states.astype(jnp.bfloat16)
    mask_bf = attention_mask.astype(jnp.bfloat16)   # halves O(S^2) HBM traffic
    w = {k: params[k].astype(jnp.bfloat16) for k in ("wq", "wk", "wv", "wi", "wo")}
    b = {k: params[k].astype(jnp.float32) for k in ("bq", "bk", "bv", "bi", "bo")}

    def run(single_buffer_weights):
        # ---------------- pass 1: Q/K/V projection -------------------------
        proj_est = (3 * H * H * bf16 + 3 * H * f32          # weights + biases
                    + 2 * q_tile * H * bf16                  # x tile (dbl buf)
                    + 2 * 3 * q_tile * H * bf16              # q/k/v out tiles
                    + 3 * q_tile * H * f32)                  # f32 work
        proj = pl.pallas_call(
            _make_qkv_proj_kernel(1.0 / math.sqrt(H)),
            out_shape=tuple(jax.ShapeDtypeStruct((B, S, H), jnp.bfloat16)
                            for _ in range(3)),
            grid_spec=pltpu.PrefetchScalarGridSpec(
                num_scalar_prefetch=0,
                grid=(B, n_q),
                in_specs=[
                    pl.BlockSpec((None, q_tile, H), lambda bb, si: (bb, si, 0)),
                    _const_spec((H, H), single_buffer_weights),
                    _const_spec((1, H), single_buffer_weights),
                    _const_spec((H, H), single_buffer_weights),
                    _const_spec((1, H), single_buffer_weights),
                    _const_spec((H, H), single_buffer_weights),
                    _const_spec((1, H), single_buffer_weights),
                ],
                out_specs=tuple(
                    pl.BlockSpec((None, q_tile, H), lambda bb, si: (bb, si, 0))
                    for _ in range(3)),
            ),
            compiler_params=pltpu.CompilerParams(
                dimension_semantics=("parallel", "parallel"),
                vmem_limit_bytes=_vmem_limit(proj_est, cap)),
        )
        q_bf, k_bf, v_bf = proj(x_bf, w["wq"], b["bq"],
                                w["wk"], b["bk"], w["wv"], b["bv"])

        # ---------------- pass 2: attention + FFN ---------------------------
        ffn_invariant = single_buffer_weights and (n_i == 1)
        main_est = (2 * H * i_tile * (1 if ffn_invariant else 2) * bf16  # wi+wo
                    + (i_tile + H) * f32                                 # bi+bo
                    + 2 * (q_tile * H * bf16            # q tile (dbl buf)
                           + 2 * S * H * bf16           # k + v
                           + q_tile * S * bf16          # mask
                           + q_tile * H * f32)          # out tile
                    + q_tile * H * (bf16 + f32)         # scratch (ctx + acc)
                    + (2 * q_tile * S + 2 * q_tile * i_tile + q_tile * H) * f32)

        main = pl.pallas_call(
            _attn_ffn_kernel,
            out_shape=jax.ShapeDtypeStruct((B, S, H), hidden_states.dtype),
            grid_spec=pltpu.PrefetchScalarGridSpec(
                num_scalar_prefetch=0,
                grid=(B, n_q, n_i),
                in_specs=[
                    pl.BlockSpec((None, q_tile, H), lambda bb, qi, ii: (bb, qi, 0)),
                    pl.BlockSpec((None, S, H), lambda bb, qi, ii: (bb, 0, 0)),
                    pl.BlockSpec((None, S, H), lambda bb, qi, ii: (bb, 0, 0)),
                    pl.BlockSpec((None, q_tile, S), lambda bb, qi, ii: (bb, qi, 0)),
                    _spec((H, i_tile), lambda bb, qi, ii: (0, ii), ffn_invariant),
                    _spec((1, i_tile), lambda bb, qi, ii: (0, ii), ffn_invariant),
                    _spec((i_tile, H), lambda bb, qi, ii: (ii, 0), ffn_invariant),
                    _spec((1, H), lambda bb, qi, ii: (0, 0), single_buffer_weights),
                ],
                out_specs=pl.BlockSpec((None, q_tile, H),
                                       lambda bb, qi, ii: (bb, qi, 0)),
                scratch_shapes=[pltpu.VMEM((q_tile, H), jnp.bfloat16),
                                pltpu.VMEM((q_tile, H), jnp.float32)],
            ),
            compiler_params=pltpu.CompilerParams(
                dimension_semantics=("parallel", "parallel", "arbitrary"),
                vmem_limit_bytes=_vmem_limit(main_est, cap)),
        )
        return main(q_bf, k_bf, v_bf, mask_bf,
                    w["wi"], b["bi"], w["wo"], b["bo"])

    if not hasattr(pl, "Buffered"):
        return run(False)

    fallback_exc = (TypeError, ValueError, NotImplementedError)
    if hasattr(pltpu, "LoweringException"):
        fallback_exc = fallback_exc + (pltpu.LoweringException,)
    try:
        return run(True)
    except fallback_exc:
        # pipeline_mode=pl.Buffered(1) unsupported on this jax/Mosaic version;
        # the only cost of this fallback is double-buffered invariant weights.
        return run(False)


# ---------------------------------------------------------------------------
# Plain-JAX f32 reference mirroring the PyTorch forward
# ---------------------------------------------------------------------------
def _reference(hidden_states, attention_mask, params):
    H = hidden_states.shape[-1]
    q = hidden_states @ params["wq"] + params["bq"]
    k = hidden_states @ params["wk"] + params["bk"]
    v = hidden_states @ params["wv"] + params["bv"]
    scores = jnp.einsum("bqh,bkh->bqk", q, k) / math.sqrt(H) + attention_mask
    probs = jax.nn.softmax(scores, axis=-1)
    ctx = jnp.einsum("bqk,bkh->bqh", probs, v)
    inter = _gelu_tanh(ctx @ params["wi"] + params["bi"])
    return inter @ params["wo"] + params["bo"]


def _init_params(key, H, I):
    ks = jax.random.split(key, 10)
    scale = 0.02
    return {
        "wq": scale * jax.random.normal(ks[0], (H, H), jnp.float32),
        "bq": scale * jax.random.normal(ks[1], (1, H), jnp.float32),
        "wk": scale * jax.random.normal(ks[2], (H, H), jnp.float32),
        "bk": scale * jax.random.normal(ks[3], (1, H), jnp.float32),
        "wv": scale * jax.random.normal(ks[4], (H, H), jnp.float32),
        "bv": scale * jax.random.normal(ks[5], (1, H), jnp.float32),
        "wi": scale * jax.random.normal(ks[6], (H, I), jnp.float32),
        "bi": scale * jax.random.normal(ks[7], (1, I), jnp.float32),
        "wo": scale * jax.random.normal(ks[8], (I, H), jnp.float32),
        "bo": scale * jax.random.normal(ks[9], (1, H), jnp.float32),
    }


if __name__ == "__main__":
    # NOTE: correctness-only shapes; for perf measurements use H, I multiples
    # of 128 and q_tile a multiple of 16 (bf16 sublane packing).
    B, S, H, I = 2, 8, 32, 64  # batch, seq, hidden, intermediate

    key = jax.random.PRNGKey(0)
    k_x, k_p = jax.random.split(key, 2)

    hidden_states = jax.random.normal(k_x, (B, S, H), jnp.float32)
    # additive attention mask: 0 = keep, -1e9 = masked (mask last 2 keys of batch 1)
    attention_mask = jnp.zeros((B, S, S), jnp.float32)
    attention_mask = attention_mask.at[1, :, S - 2:].set(-1e9)

    params = _init_params(k_p, H, I)

    out = splinter_layer(hidden_states, attention_mask, params)
    out = jax.block_until_ready(out)

    ref = _reference(hidden_states, attention_mask, params)
    assert out.shape == (B, S, H)
    err = float(jnp.max(jnp.abs(out - ref)))
    assert err < 1e-3, f"mismatch vs reference: max abs err {err}"

    print("KERNEL_OK")
</pallas_src>

<mosaic_0001>
module attributes {stable_mosaic.version = 11 : i64} {
  func.func @kernel(%arg0: i32, %arg1: i32, %arg2: memref<1x8x32xbf16, #tpu.memory_space<vmem>>, %arg3: memref<32x32xbf16, #tpu.memory_space<vmem>>, %arg4: memref<1x32xf32, #tpu.memory_space<vmem>>, %arg5: memref<32x32xbf16, #tpu.memory_space<vmem>>, %arg6: memref<1x32xf32, #tpu.memory_space<vmem>>, %arg7: memref<32x32xbf16, #tpu.memory_space<vmem>>, %arg8: memref<1x32xf32, #tpu.memory_space<vmem>>, %arg9: memref<1x8x32xbf16, #tpu.memory_space<vmem>>, %arg10: memref<1x8x32xbf16, #tpu.memory_space<vmem>>, %arg11: memref<1x8x32xbf16, #tpu.memory_space<vmem>>) attributes {dimension_semantics = [#tpu.dimension_semantics<parallel>, #tpu.dimension_semantics<parallel>], iteration_bounds = array<i64: 2, 1>, scalar_prefetch = 0 : i64, scratch_operands = 0 : i64, tpu.core_type = #tpu.core_type<tc>, window_params = [{transform_indices = @transform_0, window_bounds = array<i64: 1, 8, 32>}, {pipeline_mode = #tpu.pipeline_mode<synchronous>, transform_indices = @transform_1, window_bounds = array<i64: 32, 32>}, {pipeline_mode = #tpu.pipeline_mode<synchronous>, transform_indices = @transform_2, window_bounds = array<i64: 1, 32>}, {pipeline_mode = #tpu.pipeline_mode<synchronous>, transform_indices = @transform_3, window_bounds = array<i64: 32, 32>}, {pipeline_mode = #tpu.pipeline_mode<synchronous>, transform_indices = @transform_4, window_bounds = array<i64: 1, 32>}, {pipeline_mode = #tpu.pipeline_mode<synchronous>, transform_indices = @transform_5, window_bounds = array<i64: 32, 32>}, {pipeline_mode = #tpu.pipeline_mode<synchronous>, transform_indices = @transform_6, window_bounds = array<i64: 1, 32>}, {transform_indices = @transform_7, window_bounds = array<i64: 1, 8, 32>}, {transform_indices = @transform_8, window_bounds = array<i64: 1, 8, 32>}, {transform_indices = @transform_9, window_bounds = array<i64: 1, 8, 32>}]} {
    %c0 = arith.constant 0 : index
    %c0_0 = arith.constant 0 : index
    %c0_1 = arith.constant 0 : index
    %0 = vector.load %arg2[%c0, %c0_0, %c0_1] : memref<1x8x32xbf16, #tpu.memory_space<vmem>>, vector<1x8x32xbf16>
    %1 = vector.shape_cast %0 : vector<1x8x32xbf16> to vector<8x32xbf16>
    %c0_2 = arith.constant 0 : index
    %c0_3 = arith.constant 0 : index
    %2 = vector.load %arg3[%c0_2, %c0_3] : memref<32x32xbf16, #tpu.memory_space<vmem>>, vector<32x32xbf16>
    %cst = arith.constant dense<0.000000e+00> : vector<8x32xf32>
    %3 = tpu.matmul %1, %2, %cst {dimension_numbers = #tpu.dot_dimension_numbers<[1], [0], [0], [1], [0, 0, 1, 1], [], []>} : vector<8x32xbf16>, vector<32x32xbf16>, vector<8x32xf32> -> vector<8x32xf32>
    %c0_4 = arith.constant 0 : index
    %c0_5 = arith.constant 0 : index
    %4 = vector.load %arg4[%c0_4, %c0_5] : memref<1x32xf32, #tpu.memory_space<vmem>>, vector<1x32xf32>
    %5 = vector.broadcast %4 : vector<1x32xf32> to vector<8x32xf32>
    %6 = arith.addf %3, %5 : vector<8x32xf32>
    %cst_6 = arith.constant 0.176776692 : f32
    %7 = vector.broadcast %cst_6 : f32 to vector<8x32xf32>
    %8 = arith.mulf %6, %7 : vector<8x32xf32>
    %9 = arith.truncf %8 : vector<8x32xf32> to vector<8x32xbf16>
    %c0_7 = arith.constant 0 : index
    %c0_8 = arith.constant 0 : index
    %c0_9 = arith.constant 0 : index
    %10 = vector.load %arg9[%c0_7, %c0_8, %c0_9] : memref<1x8x32xbf16, #tpu.memory_space<vmem>>, vector<1x8x32xbf16>
    %11 = vector.shape_cast %10 : vector<1x8x32xbf16> to vector<8x32xbf16>
    %12 = vector.shape_cast %9 : vector<8x32xbf16> to vector<1x8x32xbf16>
    tpu.vector_store %arg9[%c0_7, %c0_8, %c0_9], %12 {strides = array<i32>} : memref<1x8x32xbf16, #tpu.memory_space<vmem>>, vector<1x8x32xbf16>,
    %c0_10 = arith.constant 0 : index
    %c0_11 = arith.constant 0 : index
    %13 = vector.load %arg5[%c0_10, %c0_11] : memref<32x32xbf16, #tpu.memory_space<vmem>>, vector<32x32xbf16>
    %cst_12 = arith.constant dense<0.000000e+00> : vector<8x32xf32>
    %14 = tpu.matmul %1, %13, %cst_12 {dimension_numbers = #tpu.dot_dimension_numbers<[1], [0], [0], [1], [0, 0, 1, 1], [], []>} : vector<8x32xbf16>, vector<32x32xbf16>, vector<8x32xf32> -> vector<8x32xf32>
    %c0_13 = arith.constant 0 : index
    %c0_14 = arith.constant 0 : index
    %15 = vector.load %arg6[%c0_13, %c0_14] : memref<1x32xf32, #tpu.memory_space<vmem>>, vector<1x32xf32>
    %16 = vector.broadcast %15 : vector<1x32xf32> to vector<8x32xf32>
    %17 = arith.addf %14, %16 : vector<8x32xf32>
    %18 = arith.truncf %17 : vector<8x32xf32> to vector<8x32xbf16>
    %c0_15 = arith.constant 0 : index
    %c0_16 = arith.constant 0 : index
    %c0_17 = arith.constant 0 : index
    %19 = vector.load %arg10[%c0_15, %c0_16, %c0_17] : memref<1x8x32xbf16, #tpu.memory_space<vmem>>, vector<1x8x32xbf16>
    %20 = vector.shape_cast %19 : vector<1x8x32xbf16> to vector<8x32xbf16>
    %21 = vector.shape_cast %18 : vector<8x32xbf16> to vector<1x8x32xbf16>
    tpu.vector_store %arg10[%c0_15, %c0_16, %c0_17], %21 {strides = array<i32>} : memref<1x8x32xbf16, #tpu.memory_space<vmem>>, vector<1x8x32xbf16>,
    %c0_18 = arith.constant 0 : index
    %c0_19 = arith.constant 0 : index
    %22 = vector.load %arg7[%c0_18, %c0_19] : memref<32x32xbf16, #tpu.memory_space<vmem>>, vector<32x32xbf16>
    %cst_20 = arith.constant dense<0.000000e+00> : vector<8x32xf32>
    %23 = tpu.matmul %1, %22, %cst_20 {dimension_numbers = #tpu.dot_dimension_numbers<[1], [0], [0], [1], [0, 0, 1, 1], [], []>} : vector<8x32xbf16>, vector<32x32xbf16>, vector<8x32xf32> -> vector<8x32xf32>
    %c0_21 = arith.constant 0 : index
    %c0_22 = arith.constant 0 : index
    %24 = vector.load %arg8[%c0_21, %c0_22] : memref<1x32xf32, #tpu.memory_space<vmem>>, vector<1x32xf32>
    %25 = vector.broadcast %24 : vector<1x32xf32> to vector<8x32xf32>
    %26 = arith.addf %23, %25 : vector<8x32xf32>
    %27 = arith.truncf %26 : vector<8x32xf32> to vector<8x32xbf16>
    %c0_23 = arith.constant 0 : index
    %c0_24 = arith.constant 0 : index
    %c0_25 = arith.constant 0 : index
    %28 = vector.load %arg11[%c0_23, %c0_24, %c0_25] : memref<1x8x32xbf16, #tpu.memory_space<vmem>>, vector<1x8x32xbf16>
    %29 = vector.shape_cast %28 : vector<1x8x32xbf16> to vector<8x32xbf16>
    %30 = vector.shape_cast %27 : vector<8x32xbf16> to vector<1x8x32xbf16>
    tpu.vector_store %arg11[%c0_23, %c0_24, %c0_25], %30 {strides = array<i32>} : memref<1x8x32xbf16, #tpu.memory_space<vmem>>, vector<1x8x32xbf16>,
    return
  }
  func.func @transform_0(%arg0: i32, %arg1: i32) -> (i32, i32, i32) {
    %c0_i32 = arith.constant 0 : i32
    %c0_i32_0 = arith.constant 0 : i32
    return %arg0, %arg1, %c0_i32 : i32, i32, i32
  }
  func.func @transform_1(%arg0: i32, %arg1: i32) -> (i32, i32) {
    %c0_i32 = arith.constant 0 : i32
    %c0_i32_0 = arith.constant 0 : i32
    %c0_i32_1 = arith.constant 0 : i32
    return %c0_i32, %c0_i32_0 : i32, i32
  }
  func.func @transform_2(%arg0: i32, %arg1: i32) -> (i32, i32) {
    %c0_i32 = arith.constant 0 : i32
    %c0_i32_0 = arith.constant 0 : i32
    %c0_i32_1 = arith.constant 0 : i32
    return %c0_i32, %c0_i32_0 : i32, i32
  }
  func.func @transform_3(%arg0: i32, %arg1: i32) -> (i32, i32) {
    %c0_i32 = arith.constant 0 : i32
    %c0_i32_0 = arith.constant 0 : i32
    %c0_i32_1 = arith.constant 0 : i32
    return %c0_i32, %c0_i32_0 : i32, i32
  }
  func.func @transform_4(%arg0: i32, %arg1: i32) -> (i32, i32) {
    %c0_i32 = arith.constant 0 : i32
    %c0_i32_0 = arith.constant 0 : i32
    %c0_i32_1 = arith.constant 0 : i32
    return %c0_i32, %c0_i32_0 : i32, i32
  }
  func.func @transform_5(%arg0: i32, %arg1: i32) -> (i32, i32) {
    %c0_i32 = arith.constant 0 : i32
    %c0_i32_0 = arith.constant 0 : i32
    %c0_i32_1 = arith.constant 0 : i32
    return %c0_i32, %c0_i32_0 : i32, i32
  }
  func.func @transform_6(%arg0: i32, %arg1: i32) -> (i32, i32) {
    %c0_i32 = arith.constant 0 : i32
    %c0_i32_0 = arith.constant 0 : i32
    %c0_i32_1 = arith.constant 0 : i32
    return %c0_i32, %c0_i32_0 : i32, i32
  }
  func.func @transform_7(%arg0: i32, %arg1: i32) -> (i32, i32, i32) {
    %c0_i32 = arith.constant 0 : i32
    %c0_i32_0 = arith.constant 0 : i32
    return %arg0, %arg1, %c0_i32 : i32, i32, i32
  }
  func.func @transform_8(%arg0: i32, %arg1: i32) -> (i32, i32, i32) {
    %c0_i32 = arith.constant 0 : i32
    %c0_i32_0 = arith.constant 0 : i32
    return %arg0, %arg1, %c0_i32 : i32, i32, i32
  }
  func.func @transform_9(%arg0: i32, %arg1: i32) -> (i32, i32, i32) {
    %c0_i32 = arith.constant 0 : i32
    %c0_i32_0 = arith.constant 0 : i32
    return %arg0, %arg1, %c0_i32 : i32, i32, i32
  }
}

</mosaic_0001>

<llo_original>
// kernel: tpu_custom_call.1
$region0: #{tpu_custom_call.1}
  #allocation0 [shape = 'u32[]', space=smem, size = 0x4, offset = 0x4, fixed_abs, tag = 'smem constant byte address 0x4 - core index']
  #allocation1 [shape = 'u32[72,128]{1,0:T(1,128)}', space=vmem, size = 0x9000, scoped, tag = 'internal scratch']
  %s0 = inlined_call_operand.hbm [shape: bf16[2,8,32], index: 0, kind: input, shape index: {}]
  %s1 = inlined_call_operand.hbm [shape: bf16[32,32], index: 1, kind: input, shape index: {}]
  %s2 = inlined_call_operand.vmem [shape: f32[1,32], index: 2, kind: input, shape index: {}]
  %s3 = inlined_call_operand.hbm [shape: bf16[32,32], index: 3, kind: input, shape index: {}]
  %s4 = inlined_call_operand.vmem [shape: f32[1,32], index: 4, kind: input, shape index: {}]
  %s5 = inlined_call_operand.hbm [shape: bf16[32,32], index: 5, kind: input, shape index: {}]
  %s6 = inlined_call_operand.vmem [shape: f32[1,32], index: 6, kind: input, shape index: {}]
  %s7 = inlined_call_operand.hbm [shape: bf16[2,8,32], index: 7, kind: output, shape index: {0}]
  %s8 = inlined_call_operand.hbm [shape: bf16[2,8,32], index: 8, kind: output, shape index: {1}]
  %s9 = inlined_call_operand.hbm [shape: bf16[2,8,32], index: 9, kind: output, shape index: {2}]
  %10 = xla_tuple %s7, %s8, %s9
  %s11 = sld [smem:[#allocation0]]
  $region93: #{tpu_custom_call.1} parent=0
    _
  %s13 = ssub.s32 1, %s11
  %s14 = scalar_select 0, %s13, %s11
  $region1: #{tpu_custom_call.1} parent=0
    #allocation2 [shape = 'u8[4096]{0}', space=vmem, size = 0x1000, scoped, tag = 'input window, operand 0']
    #allocation3 [shape = 's32[2]{0}', space=sflag, size = 0x8, scoped, tag = 'scoped memory for tpu_custom_call.1']
    #allocation4 [shape = 's32[2]{0}', space=sflag, size = 0x8, scoped, tag = 'scoped memory for tpu_custom_call.1']
    #allocation5 [shape = 'u8[8192]{0}', space=vmem, size = 0x2000, scoped, tag = 'input window, operand 1, single buffered']
    #allocation6 [shape = 's32[1]{0}', space=sflag, size = 0x4, scoped, tag = 'scoped memory for tpu_custom_call.1']
    #allocation7 [shape = 'u8[8192]{0}', space=vmem, size = 0x2000, scoped, tag = 'input window, operand 3, single buffered']
    #allocation8 [shape = 'u8[8192]{0}', space=vmem, size = 0x2000, scoped, tag = 'input window, operand 5, single buffered']
    #allocation9 [shape = 's32[1]{0}', space=sflag, size = 0x4, scoped, tag = 'scoped memory for tpu_custom_call.1']
    #allocation10 [shape = 'u8[4096]{0}', space=vmem, size = 0x1000, scoped, tag = 'output window, operand 0']
    #allocation11 [shape = 'u8[4096]{0}', space=vmem, size = 0x1000, scoped, tag = 'output window, operand 1']
    #allocation12 [shape = 's32[2]{0}', space=sflag, size = 0x8, scoped, tag = 'scoped memory for tpu_custom_call.1']
    #allocation13 [shape = 'u8[4096]{0}', space=vmem, size = 0x1000, scoped, tag = 'output window, operand 2']
    %15 = vsyncpa [#allocation3], 0
    %s16 = scalar_lea.sflag [#allocation3], 1
    %17 = vsyncpa %s16, 0
    %18 = vsyncpa [#allocation6], 0
    %19 = vsyncpa [#allocation9], 0
    %20 = vsyncpa [#allocation4], 0
    %s21 = scalar_lea.sflag [#allocation4], 1
    %22 = vsyncpa %s21, 0
    %23 = vsyncpa [#allocation12], 0
    %s24 = scalar_lea.sflag [#allocation12], 1
    %25 = vsyncpa %s24, 0
    loop: start=0, step=1, limit=4
    $region2: #{tpu_custom_call.1} parent=1 // loop_pre_header
      _
    $region3: #{tpu_custom_call.1} parent=1 // loop_header
      %s27 = sphi 0, %s31
      %p28 = scmp.ge.s32.totalorder %s27, 4
      %s34 = sphi 0, %s46
      %s35 = sphi 0, %s42
      %s36 = sphi 0, %s34
      %s37 = sphi 0, %s35
      %s38 = sphi 0, %s36
      %s39 = sphi 0, %s37
      %s51 = sphi 0, %s53
      %s54 = sphi 0, %s51
      %s55 = sphi 0, %s54
      %s71 = sphi 0, %s55
      %s75 = sphi 0, %s75
      %s77 = sphi 0, %s75
      %s78 = sphi 0, %s77
      %s92 = sphi 0, %s78
      %s96 = sphi 0, %s96
      %s98 = sphi 0, %s96
      %s99 = sphi 0, %s98
      %s113 = sphi 0, %s99
      %s117 = sphi 0, %s117
      %s119 = sphi 0, %s117
      %s120 = sphi 0, %s119
      %s134 = sphi 0, %s120
      %s138 = sphi 0, %s138
      %s140 = sphi 0, %s138
      %s141 = sphi 0, %s140
      %s155 = sphi 0, %s141
      %s159 = sphi 0, %s159
      %s161 = sphi 0, %s159
      %s162 = sphi 0, %s161
      %s176 = sphi 0, %s162
      %s180 = sphi 0, %s180
      %s182 = sphi 0, %s180
      %s183 = sphi 0, %s182
      %s197 = sphi 0, %s183
      %s205 = sphi 0, %s207
      %s208 = sphi 0, %s205
      %s209 = sphi 0, %s208
      %s225 = sphi 0, %s209
      %s233 = sphi 0, %s235
      %s236 = sphi 0, %s233
      %s237 = sphi 0, %s236
      %s253 = sphi 0, %s237
      %s261 = sphi 0, %s263
      %s264 = sphi 0, %s261
      %s265 = sphi 0, %s264
      %s281 = sphi 0, %s265
    $region4: #{tpu_custom_call.1} parent=1 // loop_header_branch
      %30 = sbr.rel (%p28) target = $region8
    $region5: #{tpu_custom_call.1} parent=1 // loop_body
      %s32 = ssub.s32 %s27, 1
      %s33 = ssub.s32 %s27, 2
      %s40 = sadd.s32 1, %s35
      %p41 = scmp.ge.s32.totalorder %s40, 1
      %s42 = scalar_select %p41, 0, %s40
      %s43 = sadd.s32 1, %s34
      %s44 = scalar_select %p41, %s43, %s34
      %p45 = scmp.ge.s32.totalorder %s44, 2
      %s46 = scalar_select %p45, 0, %s44
      %s47 = ssub.s32 %s34, %s46
      %s48 = ssub.s32 %s35, %s42
      %s49 = sor.u32 %s47, %s48
      %p50 = scmp.eq.s32.totalorder %s49, 0
      %s52 = sadd.s32 %s51, 1
      %s53 = scalar_select %p50, %s51, %s52
      %p56 = pneg %p50
      %p57 = scmp.eq.s32.totalorder %s27, 1
      %p58 = por %p56, %p57
      %p59 = scmp.ne.s32.totalorder %s51, %s54
      %p60 = scmp.eq.s32.totalorder %s27, 0
      %p61 = por %p59, %p60
      %p62 = scmp.ne.s32.totalorder %s51, %s54
      %p63 = scmp.eq.s32.totalorder %s32, 1
      %p64 = por %p62, %p63
      %p65 = scmp.ne.s32.totalorder %s54, %s55
      %p66 = scmp.eq.s32.totalorder %s32, 0
      %p67 = por %p65, %p66
      %p68 = scmp.ne.s32.totalorder %s54, %s55
      %p69 = scmp.eq.s32.totalorder %s33, 1
      %p70 = por %p68, %p69
      %p72 = scmp.ne.s32.totalorder %s55, %s71
      %p73 = scmp.eq.s32.totalorder %s33, 0
      %p74 = por %p72, %p73
      %s76 = sadd.s32 %s75, 1
      %p79 = scmp.eq.s32.totalorder %s27, 1
      %p80 = scmp.ne.s32.totalorder %s75, %s77
      %p81 = scmp.eq.s32.totalorder %s27, 0
      %p82 = por %p80, %p81
      %p83 = scmp.ne.s32.totalorder %s75, %s77
      %p84 = scmp.eq.s32.totalorder %s32, 1
      %p85 = por %p83, %p84
      %p86 = scmp.ne.s32.totalorder %s77, %s78
      %p87 = scmp.eq.s32.totalorder %s32, 0
      %p88 = por %p86, %p87
      %p89 = scmp.ne.s32.totalorder %s77, %s78
      %p90 = scmp.eq.s32.totalorder %s33, 1
      %p91 = por %p89, %p90
      %p93 = scmp.ne.s32.totalorder %s78, %s92
      %p94 = scmp.eq.s32.totalorder %s33, 0
      %p95 = por %p93, %p94
      %s97 = sadd.s32 %s96, 1
      %p100 = scmp.eq.s32.totalorder %s27, 1
      %p101 = scmp.ne.s32.totalorder %s96, %s98
      %p102 = scmp.eq.s32.totalorder %s27, 0
      %p103 = por %p101, %p102
      %p104 = scmp.ne.s32.totalorder %s96, %s98
      %p105 = scmp.eq.s32.totalorder %s32, 1
      %p106 = por %p104, %p105
      %p107 = scmp.ne.s32.totalorder %s98, %s99
      %p108 = scmp.eq.s32.totalorder %s32, 0
      %p109 = por %p107, %p108
      %p110 = scmp.ne.s32.totalorder %s98, %s99
      %p111 = scmp.eq.s32.totalorder %s33, 1
      %p112 = por %p110, %p111
      %p114 = scmp.ne.s32.totalorder %s99, %s113
      %p115 = scmp.eq.s32.totalorder %s33, 0
      %p116 = por %p114, %p115
      %s118 = sadd.s32 %s117, 1
      %p121 = scmp.eq.s32.totalorder %s27, 1
      %p122 = scmp.ne.s32.totalorder %s117, %s119
      %p123 = scmp.eq.s32.totalorder %s27, 0
      %p124 = por %p122, %p123
      %p125 = scmp.ne.s32.totalorder %s117, %s119
      %p126 = scmp.eq.s32.totalorder %s32, 1
      %p127 = por %p125, %p126
      %p128 = scmp.ne.s32.totalorder %s119, %s120
      %p129 = scmp.eq.s32.totalorder %s32, 0
      %p130 = por %p128, %p129
      %p131 = scmp.ne.s32.totalorder %s119, %s120
      %p132 = scmp.eq.s32.totalorder %s33, 1
      %p133 = por %p131, %p132
      %p135 = scmp.ne.s32.totalorder %s120, %s134
      %p136 = scmp.eq.s32.totalorder %s33, 0
      %p137 = por %p135, %p136
      %s139 = sadd.s32 %s138, 1
      %p142 = scmp.eq.s32.totalorder %s27, 1
      %p143 = scmp.ne.s32.totalorder %s138, %s140
      %p144 = scmp.eq.s32.totalorder %s27, 0
      %p145 = por %p143, %p144
      %p146 = scmp.ne.s32.totalorder %s138, %s140
      %p147 = scmp.eq.s32.totalorder %s32, 1
      %p148 = por %p146, %p147
      %p149 = scmp.ne.s32.totalorder %s140, %s141
      %p150 = scmp.eq.s32.totalorder %s32, 0
      %p151 = por %p149, %p150
      %p152 = scmp.ne.s32.totalorder %s140, %s141
      %p153 = scmp.eq.s32.totalorder %s33, 1
      %p154 = por %p152, %p153
      %p156 = scmp.ne.s32.totalorder %s141, %s155
      %p157 = scmp.eq.s32.totalorder %s33, 0
      %p158 = por %p156, %p157
      %s160 = sadd.s32 %s159, 1
      %p163 = scmp.eq.s32.totalorder %s27, 1
      %p164 = scmp.ne.s32.totalorder %s159, %s161
      %p165 = scmp.eq.s32.totalorder %s27, 0
      %p166 = por %p164, %p165
      %p167 = scmp.ne.s32.totalorder %s159, %s161
      %p168 = scmp.eq.s32.totalorder %s32, 1
      %p169 = por %p167, %p168
      %p170 = scmp.ne.s32.totalorder %s161, %s162
      %p171 = scmp.eq.s32.totalorder %s32, 0
      %p172 = por %p170, %p171
      %p173 = scmp.ne.s32.totalorder %s161, %s162
      %p174 = scmp.eq.s32.totalorder %s33, 1
      %p175 = por %p173, %p174
      %p177 = scmp.ne.s32.totalorder %s162, %s176
      %p178 = scmp.eq.s32.totalorder %s33, 0
      %p179 = por %p177, %p178
      %s181 = sadd.s32 %s180, 1
      %p184 = scmp.eq.s32.totalorder %s27, 1
      %p185 = scmp.ne.s32.totalorder %s180, %s182
      %p186 = scmp.eq.s32.totalorder %s27, 0
      %p187 = por %p185, %p186
      %p188 = scmp.ne.s32.totalorder %s180, %s182
      %p189 = scmp.eq.s32.totalorder %s32, 1
      %p190 = por %p188, %p189
      %p191 = scmp.ne.s32.totalorder %s182, %s183
      %p192 = scmp.eq.s32.totalorder %s32, 0
      %p193 = por %p191, %p192
      %p194 = scmp.ne.s32.totalorder %s182, %s183
      %p195 = scmp.eq.s32.totalorder %s33, 1
      %p196 = por %p194, %p195
      %p198 = scmp.ne.s32.totalorder %s183, %s197
      %p199 = scmp.eq.s32.totalorder %s33, 0
      %p200 = por %p198, %p199
      %s201 = ssub.s32 %s34, %s46
      %s202 = ssub.s32 %s35, %s42
      %s203 = sor.u32 %s201, %s202
      %p204 = scmp.eq.s32.totalorder %s203, 0
      %s206 = sadd.s32 %s205, 1
      %s207 = scalar_select %p204, %s205, %s206
      %p210 = pneg %p204
      %p211 = scmp.eq.s32.totalorder %s27, 1
      %p212 = por %p210, %p211
      %p213 = scmp.ne.s32.totalorder %s205, %s208
      %p214 = scmp.eq.s32.totalorder %s27, 0
      %p215 = por %p213, %p214
      %p216 = scmp.ne.s32.totalorder %s205, %s208
      %p217 = scmp.eq.s32.totalorder %s32, 1
      %p218 = por %p216, %p217
      %p219 = scmp.ne.s32.totalorder %s208, %s209
      %p220 = scmp.eq.s32.totalorder %s32, 0
      %p221 = por %p219, %p220
      %p222 = scmp.ne.s32.totalorder %s208, %s209
      %p223 = scmp.eq.s32.totalorder %s33, 1
      %p224 = por %p222, %p223
      %p226 = scmp.ne.s32.totalorder %s209, %s225
      %p227 = scmp.eq.s32.totalorder %s33, 0
      %p228 = por %p226, %p227
      %s229 = ssub.s32 %s34, %s46
      %s230 = ssub.s32 %s35, %s42
      %s231 = sor.u32 %s229, %s230
      %p232 = scmp.eq.s32.totalorder %s231, 0
      %s234 = sadd.s32 %s233, 1
      %s235 = scalar_select %p232, %s233, %s234
      %p238 = pneg %p232
      %p239 = scmp.eq.s32.totalorder %s27, 1
      %p240 = por %p238, %p239
      %p241 = scmp.ne.s32.totalorder %s233, %s236
      %p242 = scmp.eq.s32.totalorder %s27, 0
      %p243 = por %p241, %p242
      %p244 = scmp.ne.s32.totalorder %s233, %s236
      %p245 = scmp.eq.s32.totalorder %s32, 1
      %p246 = por %p244, %p245
      %p247 = scmp.ne.s32.totalorder %s236, %s237
      %p248 = scmp.eq.s32.totalorder %s32, 0
      %p249 = por %p247, %p248
      %p250 = scmp.ne.s32.totalorder %s236, %s237
      %p251 = scmp.eq.s32.totalorder %s33, 1
      %p252 = por %p250, %p251
      %p254 = scmp.ne.s32.totalorder %s237, %s253
      %p255 = scmp.eq.s32.totalorder %s33, 0
      %p256 = por %p254, %p255
      %s257 = ssub.s32 %s34, %s46
      %s258 = ssub.s32 %s35, %s42
      %s259 = sor.u32 %s257, %s258
      %p260 = scmp.eq.s32.totalorder %s259, 0
      %s262 = sadd.s32 %s261, 1
      %s263 = scalar_select %p260, %s261, %s262
      %p266 = pneg %p260
      %p267 = scmp.eq.s32.totalorder %s27, 1
      %p268 = por %p266, %p267
      %p269 = scmp.ne.s32.totalorder %s261, %s264
      %p270 = scmp.eq.s32.totalorder %s27, 0
      %p271 = por %p269, %p270
      %p272 = scmp.ne.s32.totalorder %s261, %s264
      %p273 = scmp.eq.s32.totalorder %s32, 1
      %p274 = por %p272, %p273
      %p275 = scmp.ne.s32.totalorder %s264, %s265
      %p276 = scmp.eq.s32.totalorder %s32, 0
      %p277 = por %p275, %p276
      %p278 = scmp.ne.s32.totalorder %s264, %s265
      %p279 = scmp.eq.s32.totalorder %s33, 1
      %p280 = por %p278, %p279
      %p282 = scmp.ne.s32.totalorder %s265, %s281
      %p283 = scmp.eq.s32.totalorder %s33, 0
      %p284 = por %p282, %p283
      %p285 = scmp.le.s32.totalorder 1, %s27
      %p286 = scmp.lt.s32.totalorder %s27, 3
      %p287 = pnand %p285, %p286
      %p288 = pneg %p287
      // Predicated region
      $region9: #{tpu_custom_call.1} parent=5 // pred_check
        _
      $region10: #{tpu_custom_call.1} parent=5 // pred_check_branch
        %290 = sbr.rel (%p287) target = $region12
      $region11: #{tpu_custom_call.1} parent=5 // pred_region
        %s291 = ssub.s32 %s27, 1
        // Predicated region
        $region13: #{tpu_custom_call.1} parent=11 // pred_check
          %p292 = pneg %p88
        $region14: #{tpu_custom_call.1} parent=11 // pred_check_branch
          %294 = sbr.rel (%p292) target = $region16
        $region15: #{tpu_custom_call.1} parent=11 // pred_region
          %296 = vsyncadd [#allocation6], 0
          %s297 = sshll.u32 %s1, 4
          %s298 = int_to_ptr.hbm [resolvable:$true] %s297
          %s299 = sshll.u32 [#allocation5], 4
          %s300 = int_to_ptr.vmem [resolvable:$true] %s299
          %305 = dma.hbm_to_vmem [thread:$0]  %s298, 256, %s300, [#allocation6], 64, 64, 4
        $region16: #{tpu_custom_call.1} parent=11 // pred_fallthru
          _
        // Predicated region
        $region17: #{tpu_custom_call.1} parent=11 // pred_check
          %p306 = pneg %p109
        $region18: #{tpu_custom_call.1} parent=11 // pred_check_branch
          %308 = sbr.rel (%p306) target = $region20
        $region19: #{tpu_custom_call.1} parent=11 // pred_region
          _
        $region20: #{tpu_custom_call.1} parent=11 // pred_fallthru
          _
        // Predicated region
        $region21: #{tpu_custom_call.1} parent=11 // pred_check
          %p309 = pneg %p130
        $region22: #{tpu_custom_call.1} parent=11 // pred_check_branch
          %311 = sbr.rel (%p309) target = $region24
        $region23: #{tpu_custom_call.1} parent=11 // pred_region
          %313 = vsyncadd [#allocation6], 0
          %s314 = sshll.u32 %s3, 4
          %s315 = int_to_ptr.hbm [resolvable:$true] %s314
          %s316 = sshll.u32 [#allocation7], 4
          %s317 = int_to_ptr.vmem [resolvable:$true] %s316
          %322 = dma.hbm_to_vmem [thread:$0]  %s315, 256, %s317, [#allocation6], 64, 64, 4
        $region24: #{tpu_custom_call.1} parent=11 // pred_fallthru
          _
        // Predicated region
        $region25: #{tpu_custom_call.1} parent=11 // pred_check
          %p323 = pneg %p151
        $region26: #{tpu_custom_call.1} parent=11 // pred_check_branch
          %325 = sbr.rel (%p323) target = $region28
        $region27: #{tpu_custom_call.1} parent=11 // pred_region
          _
        $region28: #{tpu_custom_call.1} parent=11 // pred_fallthru
          _
        // Predicated region
        $region29: #{tpu_custom_call.1} parent=11 // pred_check
          %p326 = pneg %p172
        $region30: #{tpu_custom_call.1} parent=11 // pred_check_branch
          %328 = sbr.rel (%p326) target = $region32
        $region31: #{tpu_custom_call.1} parent=11 // pred_region
          %330 = vsyncadd [#allocation9], 0
          %s331 = sshll.u32 %s5, 4
          %s332 = int_to_ptr.hbm [resolvable:$true] %s331
          %s333 = sshll.u32 [#allocation8], 4
          %s334 = int_to_ptr.vmem [resolvable:$true] %s333
          %339 = dma.hbm_to_vmem [thread:$0]  %s332, 256, %s334, [#allocation9], 64, 64, 4
        $region32: #{tpu_custom_call.1} parent=11 // pred_fallthru
          _
        // Predicated region
        $region33: #{tpu_custom_call.1} parent=11 // pred_check
          %p340 = pneg %p193
        $region34: #{tpu_custom_call.1} parent=11 // pred_check_branch
          %342 = sbr.rel (%p340) target = $region36
        $region35: #{tpu_custom_call.1} parent=11 // pred_region
          _
        $region36: #{tpu_custom_call.1} parent=11 // pred_fallthru
          _
      $region12: #{tpu_custom_call.1} parent=5 // pred_fallthru
        _
      %p343 = scmp.lt.s32.totalorder %s27, 2
      // Predicated region
      $region37: #{tpu_custom_call.1} parent=5 // pred_check
        %p344 = pneg %p343
      $region38: #{tpu_custom_call.1} parent=5 // pred_check_branch
        %346 = sbr.rel (%p344) target = $region40
      $region39: #{tpu_custom_call.1} parent=5 // pred_region
        // Predicated region
        $region41: #{tpu_custom_call.1} parent=39 // pred_check
          %p347 = pneg %p61
        $region42: #{tpu_custom_call.1} parent=39 // pred_check_branch
          %349 = sbr.rel (%p347) target = $region44
        $region43: #{tpu_custom_call.1} parent=39 // pred_region
          %s350 = sand.u32 %s51, 1
          %s351 = scalar_lea.sflag [#allocation3], %s350
          %s352 = sand.u32 %s51, 1
          %s353 = smul.addr %s352, 4
          %s354 = scalar_lea.vmem [#allocation2], %s353
          %356 = vsyncadd %s351, 0
          %s357 = sadd.s32 %s35, %s34
          %s358 = smul.addr %s357, 4
          %s359 = scalar_lea.hbm %s0, %s358
          %s361 = sshll.u32 %s359, 4
          %s362 = int_to_ptr.hbm [resolvable:$true] %s361
          %s363 = sshll.u32 %s354, 4
          %s364 = int_to_ptr.vmem [resolvable:$true] %s363
          %366 = dma.hbm_to_vmem [thread:$0]  %s362, 64, %s364, %s351
        $region44: #{tpu_custom_call.1} parent=39 // pred_fallthru
          _
      $region40: #{tpu_custom_call.1} parent=5 // pred_fallthru
        _
      %p367 = scmp.le.s32.totalorder 1, %s27
      %p368 = scmp.lt.s32.totalorder %s27, 3
      %p369 = pnand %p367, %p368
      %p370 = pneg %p369
      // Predicated region
      $region45: #{tpu_custom_call.1} parent=5 // pred_check
        _
      $region46: #{tpu_custom_call.1} parent=5 // pred_check_branch
        %372 = sbr.rel (%p369) target = $region48
      $region47: #{tpu_custom_call.1} parent=5 // pred_region
        %s373 = ssub.s32 %s27, 1
        %s374 = sand.u32 %s54, 1
        %s375 = scalar_lea.sflag [#allocation3], %s374
        %s376 = sand.u32 %s54, 1
        %s377 = smul.addr %s376, 4
        %s378 = scalar_lea.vmem [#allocation2], %s377
        // Predicated region
        $region49: #{tpu_custom_call.1} parent=47 // pred_check
          %p379 = pneg %p67
        $region50: #{tpu_custom_call.1} parent=47 // pred_check_branch
          %381 = sbr.rel (%p379) target = $region52
        $region51: #{tpu_custom_call.1} parent=47 // pred_region
          %383 = dma.done %s375, 64
        $region52: #{tpu_custom_call.1} parent=47 // pred_fallthru
          _
        // Predicated region
        $region53: #{tpu_custom_call.1} parent=47 // pred_check
          %p384 = pneg %p88
        $region54: #{tpu_custom_call.1} parent=47 // pred_check_branch
          %386 = sbr.rel (%p384) target = $region56
        $region55: #{tpu_custom_call.1} parent=47 // pred_region
          %388 = dma.done [#allocation6], 256
        $region56: #{tpu_custom_call.1} parent=47 // pred_fallthru
          _
        // Predicated region
        $region57: #{tpu_custom_call.1} parent=47 // pred_check
          %p389 = pneg %p130
        $region58: #{tpu_custom_call.1} parent=47 // pred_check_branch
          %391 = sbr.rel (%p389) target = $region60
        $region59: #{tpu_custom_call.1} parent=47 // pred_region
          %393 = dma.done [#allocation6], 256
        $region60: #{tpu_custom_call.1} parent=47 // pred_fallthru
          _
        // Predicated region
        $region61: #{tpu_custom_call.1} parent=47 // pred_check
          %p394 = pneg %p172
        $region62: #{tpu_custom_call.1} parent=47 // pred_check_branch
          %396 = sbr.rel (%p394) target = $region64
        $region63: #{tpu_custom_call.1} parent=47 // pred_region
          %398 = dma.done [#allocation9], 256
        $region64: #{tpu_custom_call.1} parent=47 // pred_fallthru
          _
        %s399 = sand.u32 %s54, 1
        %s400 = scalar_lea.sflag [#allocation3], %s399
        %s401 = sand.u32 %s54, 1
        %s402 = smul.addr %s401, 4
        %s403 = scalar_lea.vmem [#allocation2], %s402
        %p404 = pneg %p67
        %p405 = pneg %p64
        %p406 = pneg %p88
        %p407 = pneg %p85
        %p408 = pneg %p109
        %p409 = pneg %p106
        %p410 = pneg %p130
        %p411 = pneg %p127
        %p412 = pneg %p151
        %p413 = pneg %p148
        %p414 = pneg %p172
        %p415 = pneg %p169
        %p416 = pneg %p193
        %p417 = pneg %p190
        %p418 = pneg %p221
        %p419 = pneg %p218
        %s420 = sand.u32 %s208, 1
        %s421 = scalar_lea.sflag [#allocation4], %s420
        %s422 = sand.u32 %s208, 1
        %s423 = smul.addr %s422, 4
        %s424 = scalar_lea.vmem [#allocation10], %s423
        %p425 = pneg %p249
        %p426 = pneg %p246
        %s427 = sand.u32 %s32, 1
        %s428 = scalar_lea.sflag [#allocation12], %s427
        %s429 = sand.u32 %s236, 1
        %s430 = smul.addr %s429, 4
        %s431 = scalar_lea.vmem [#allocation11], %s430
        %p432 = pneg %p277
        %p433 = pneg %p274
        %s434 = sand.u32 %s32, 1
        %s435 = scalar_lea.sflag [#allocation12], %s434
        %s436 = sand.u32 %s264, 1
        %s437 = smul.addr %s436, 4
        %s438 = scalar_lea.vmem [#allocation13], %s437
        %v440 = vld [vmem:[%s378] sm:$0xf]
        %v441 = vld [vmem:[#allocation5] sm:$0xf]
        %v442 = vld [vmem:[#allocation5 + $0x4] sm:$0xf]
        %v443 = vld [vmem:[#allocation5 + $0x8] sm:$0xf]
        %v444 = vld [vmem:[#allocation5 + $0xc] sm:$0xf]
        %v445 = vld [vmem:[%s2] sm:$0x1]
        %v447 = vperm.slane %v445, 0
        %v453 = vunpack.c.l.b16 %v441
        %v454 = vunpack.c.l.b16 %v442
        %v455 = vunpack.c.l.b16 %v443
        %v456 = vunpack.c.l.b16 %v444
        %v457 = vpack.c.b16 %v454, %v453
        %v458 = vpack.c.b16 %v456, %v455
        %vm461 = vcmask 261120
        %v463 = vsel %vm461, %v440, 0
        %465 = vmatpush.bf16.msra.mxu0 0
        %466 = vmatpush.bf16.msra.mxu0 0
        %467 = vmatpush.bf16.msra.mxu0 0
        %468 = vmatpush.bf16.msra.mxu0 0
        %469 = vmatpush.bf16.msra.mxu0 0
        %470 = vmatpush.bf16.msra.mxu0 0
        %471 = vmatpush.bf16.msra.mxu0 %v458
        %472 = vmatpush.bf16.msra.mxu0 %v457
        %473 = vmatmul.bf16.gmra.mxu0 %v463
        %v474 = vpop.f32.mrf.mxu0
        %v475 = vadd.f32 %v447, %v474
        %v476 = vpop.f32.mrf.mxu0
        %477 = vdwg.mxu0
        %v478 = vmul.f32 %v475, 0.17677669
        %v479 = vpack.c.bf16 %v478, %v478
        %vm480 = vcmask 257024
        %481 = vst.msk [vmem:[%s424] sm:$0xf] %vm480, %v479
        %v482 = vld [vmem:[#allocation7] sm:$0xf]
        %v483 = vld [vmem:[#allocation7 + $0x4] sm:$0xf]
        %v484 = vld [vmem:[#allocation7 + $0x8] sm:$0xf]
        %v485 = vld [vmem:[#allocation7 + $0xc] sm:$0xf]
        %v486 = vld [vmem:[%s4] sm:$0x1]
        %v488 = vperm.slane %v486, 0
        %v494 = vunpack.c.l.b16 %v482
        %v495 = vunpack.c.l.b16 %v483
        %v496 = vunpack.c.l.b16 %v484
        %v497 = vunpack.c.l.b16 %v485
        %v498 = vpack.c.b16 %v495, %v494
        %v499 = vpack.c.b16 %v497, %v496
        %502 = vmatpush.bf16.msra.mxu0 0
        %503 = vmatpush.bf16.msra.mxu0 0
        %504 = vmatpush.bf16.msra.mxu0 0
        %505 = vmatpush.bf16.msra.mxu0 0
        %506 = vmatpush.bf16.msra.mxu0 0
        %507 = vmatpush.bf16.msra.mxu0 0
        %508 = vmatpush.bf16.msra.mxu0 %v499
        %509 = vmatpush.bf16.msra.mxu0 %v498
        %510 = vmatmul.bf16.gmra.mxu0 %v463
        %v511 = vpop.f32.mrf.mxu0
        %v512 = vadd.f32 %v488, %v511
        %v513 = vpop.f32.mrf.mxu0
        %514 = vdwg.mxu0
        %v515 = vpack.c.bf16 %v512, %v512
        %516 = vst.msk [vmem:[%s431] sm:$0xf] %vm480, %v515
        %v517 = vld [vmem:[#allocation8] sm:$0xf]
        %v518 = vld [vmem:[#allocation8 + $0x4] sm:$0xf]
        %v519 = vld [vmem:[#allocation8 + $0x8] sm:$0xf]
        %v520 = vld [vmem:[#allocation8 + $0xc] sm:$0xf]
        %v521 = vld [vmem:[%s6] sm:$0x1]
        %v523 = vperm.slane %v521, 0
        %v529 = vunpack.c.l.b16 %v517
        %v530 = vunpack.c.l.b16 %v518
        %v531 = vunpack.c.l.b16 %v519
        %v532 = vunpack.c.l.b16 %v520
        %v533 = vpack.c.b16 %v530, %v529
        %v534 = vpack.c.b16 %v532, %v531
        %537 = vmatpush.bf16.msra.mxu0 0
        %538 = vmatpush.bf16.msra.mxu0 0
        %539 = vmatpush.bf16.msra.mxu0 0
        %540 = vmatpush.bf16.msra.mxu0 0
        %541 = vmatpush.bf16.msra.mxu0 0
        %542 = vmatpush.bf16.msra.mxu0 0
        %543 = vmatpush.bf16.msra.mxu0 %v534
        %544 = vmatpush.bf16.msra.mxu0 %v533
        %545 = vmatmul.bf16.gmra.mxu0 %v463
        %v546 = vpop.f32.mrf.mxu0
        %v547 = vadd.f32 %v523, %v546
        %v548 = vpop.f32.mrf.mxu0
        %549 = vdwg.mxu0
        %v550 = vpack.c.bf16 %v547, %v547
        %551 = vst.msk [vmem:[%s438] sm:$0xf] %vm480, %v550
        %s552 = sand.u32 %s208, 1
        %s553 = scalar_lea.sflag [#allocation4], %s552
        %s554 = sand.u32 %s208, 1
        %s555 = smul.addr %s554, 4
        %s556 = scalar_lea.vmem [#allocation10], %s555
        %s557 = sand.u32 %s32, 1
        %s558 = scalar_lea.sflag [#allocation12], %s557
        %s559 = sand.u32 %s236, 1
        %s560 = smul.addr %s559, 4
        %s561 = scalar_lea.vmem [#allocation11], %s560
        %s562 = sand.u32 %s32, 1
        %s563 = scalar_lea.sflag [#allocation12], %s562
        %s564 = sand.u32 %s264, 1
        %s565 = smul.addr %s564, 4
        %s566 = scalar_lea.vmem [#allocation13], %s565
        // Predicated region
        $region65: #{tpu_custom_call.1} parent=47 // pred_check
          %p567 = pneg %p218
        $region66: #{tpu_custom_call.1} parent=47 // pred_check_branch
          %569 = sbr.rel (%p567) target = $region68
        $region67: #{tpu_custom_call.1} parent=47 // pred_region
          %571 = vsyncadd %s553, 0
          %s572 = sadd.s32 %s37, %s36
          %s573 = smul.addr %s572, 4
          %s574 = scalar_lea.hbm %s7, %s573
          %s576 = sshll.u32 %s556, 4
          %s577 = int_to_ptr.vmem [resolvable:$true] %s576
          %s578 = sshll.u32 %s574, 4
          %s579 = int_to_ptr.hbm [resolvable:$true] %s578
          %581 = dma.vmem_to_hbm [thread:$0]  %s577, 64, %s579, %s553
        $region68: #{tpu_custom_call.1} parent=47 // pred_fallthru
          _
        // Predicated region
        $region69: #{tpu_custom_call.1} parent=47 // pred_check
          %p582 = pneg %p246
        $region70: #{tpu_custom_call.1} parent=47 // pred_check_branch
          %584 = sbr.rel (%p582) target = $region72
        $region71: #{tpu_custom_call.1} parent=47 // pred_region
          %586 = vsyncadd %s558, 0
          %s587 = sadd.s32 %s37, %s36
          %s588 = smul.addr %s587, 4
          %s589 = scalar_lea.hbm %s8, %s588
          %s591 = sshll.u32 %s561, 4
          %s592 = int_to_ptr.vmem [resolvable:$true] %s591
          %s593 = sshll.u32 %s589, 4
          %s594 = int_to_ptr.hbm [resolvable:$true] %s593
          %596 = dma.vmem_to_hbm [thread:$0]  %s592, 64, %s594, %s558
        $region72: #{tpu_custom_call.1} parent=47 // pred_fallthru
          _
        // Predicated region
        $region73: #{tpu_custom_call.1} parent=47 // pred_check
          %p597 = pneg %p274
        $region74: #{tpu_custom_call.1} parent=47 // pred_check_branch
          %599 = sbr.rel (%p597) target = $region76
        $region75: #{tpu_custom_call.1} parent=47 // pred_region
          %601 = vsyncadd %s563, 0
          %s602 = sadd.s32 %s37, %s36
          %s603 = smul.addr %s602, 4
          %s604 = scalar_lea.hbm %s9, %s603
          %s606 = sshll.u32 %s566, 4
          %s607 = int_to_ptr.vmem [resolvable:$true] %s606
          %s608 = sshll.u32 %s604, 4
          %s609 = int_to_ptr.hbm [resolvable:$true] %s608
          %611 = dma.vmem_to_hbm [thread:$0]  %s607, 64, %s609, %s563
        $region76: #{tpu_custom_call.1} parent=47 // pred_fallthru
          _
      $region48: #{tpu_custom_call.1} parent=5 // pred_fallthru
        _
      %p612 = scmp.le.s32.totalorder 2, %s27
      // Predicated region
      $region77: #{tpu_custom_call.1} parent=5 // pred_check
        %p613 = pneg %p612
      $region78: #{tpu_custom_call.1} parent=5 // pred_check_branch
        %615 = sbr.rel (%p613) target = $region80
      $region79: #{tpu_custom_call.1} parent=5 // pred_region
        %s616 = ssub.s32 %s27, 2
        // Predicated region
        $region81: #{tpu_custom_call.1} parent=79 // pred_check
          %p617 = pneg %p224
        $region82: #{tpu_custom_call.1} parent=79 // pred_check_branch
          %619 = sbr.rel (%p617) target = $region84
        $region83: #{tpu_custom_call.1} parent=79 // pred_region
          %s620 = sand.u32 %s209, 1
          %s621 = scalar_lea.sflag [#allocation4], %s620
          %s622 = sand.u32 %s209, 1
          %s623 = smul.addr %s622, 4
          %s624 = scalar_lea.vmem [#allocation10], %s623
          %626 = dma.done %s621, 64
        $region84: #{tpu_custom_call.1} parent=79 // pred_fallthru
          _
        // Predicated region
        $region85: #{tpu_custom_call.1} parent=79 // pred_check
          %p627 = pneg %p252
        $region86: #{tpu_custom_call.1} parent=79 // pred_check_branch
          %629 = sbr.rel (%p627) target = $region88
        $region87: #{tpu_custom_call.1} parent=79 // pred_region
          %s630 = sand.u32 %s33, 1
          %s631 = scalar_lea.sflag [#allocation12], %s630
          %s632 = sand.u32 %s237, 1
          %s633 = smul.addr %s632, 4
          %s634 = scalar_lea.vmem [#allocation11], %s633
          %636 = dma.done %s631, 64
        $region88: #{tpu_custom_call.1} parent=79 // pred_fallthru
          _
        // Predicated region
        $region89: #{tpu_custom_call.1} parent=79 // pred_check
          %p637 = pneg %p280
        $region90: #{tpu_custom_call.1} parent=79 // pred_check_branch
          %639 = sbr.rel (%p637) target = $region92
        $region91: #{tpu_custom_call.1} parent=79 // pred_region
          %s640 = sand.u32 %s33, 1
          %s641 = scalar_lea.sflag [#allocation12], %s640
          %s642 = sand.u32 %s265, 1
          %s643 = smul.addr %s642, 4
          %s644 = scalar_lea.vmem [#allocation13], %s643
          %646 = dma.done %s641, 64
        $region92: #{tpu_custom_call.1} parent=79 // pred_fallthru
          _
      $region80: #{tpu_custom_call.1} parent=5 // pred_fallthru
        _
    $region6: #{tpu_custom_call.1} parent=1 // loop_footer
      %s31 = sadd.s32 1, %s27
    $region7: #{tpu_custom_call.1} parent=1 // loop_footer_branch
      %26 = sbr.rel target = $region3
    $region8: #{tpu_custom_call.1} parent=1 // loop_exit
      _
    %647 = vsyncpa [#allocation3], 1
    %s648 = scalar_lea.sflag [#allocation3], 1
    %649 = vsyncpa %s648, 1
    %650 = vsyncpa [#allocation6], 1
    %651 = vsyncpa [#allocation9], 1
    %652 = vsyncpa [#allocation4], 1
    %s653 = scalar_lea.sflag [#allocation4], 1
    %654 = vsyncpa %s653, 1
    %655 = vsyncpa [#allocation12], 1
    %s656 = scalar_lea.sflag [#allocation12], 1
    %657 = vsyncpa %s656, 1

</llo_original>
